<compile_context>
chip_gen: v7x
topology: tpu7x:2x2x1
jax: 0.10.0
libtpu: 0.0.40
codegen_flags: <defaults>
</compile_context>

<pallas_src>
import jax
import jax.numpy as jnp
from jax.experimental import pallas as pl
from jax.experimental.pallas import tpu as pltpu

# --- synthetic problem sizes (small, consistent with the forward pass) ----
S = 2            # stacked micro-batches (grid "parallel" axis)
B = 8            # per-step batch (fills the 8-sublane vreg / MXU rows)
C = 3            # RGB channels (CLIP expects 3)
HW = 16          # spatial (CLIPProcessor would bicubic-resize to 224)
K = C * HW * HW  # flattened image length = 768
D = 128          # synthetic CLIP feature dim (ViT-B/32 would be 512)
TK = 256         # K tile -> 3 reduction steps (demo of weight streaming)

CLIP_MEAN = jnp.array([0.48145466, 0.4578275, 0.40821073], jnp.float32)
CLIP_STD = jnp.array([0.26862954, 0.26130258, 0.27577711], jnp.float32)


def _make_kernel(bsz: int, text_weight: float):
    """Build the kernel with 1/B and text_weight baked in as constants."""
    inv_b = 1.0 / float(bsz)
    text_w = float(text_weight)
    eps2 = 1e-24  # (F.normalize eps = 1e-12) ** 2

    def kernel(pred_ref, tgt_ref, w_ref, b_ref, text_ref, out_ref, acc_ref):
        # pred_ref/tgt_ref : [B, TK]  raw flattened image K-tiles in [-1, 1]
        # w_ref            : [TK, D]  bf16 projection tile (1/std folded in)
        # b_ref            : [1, D]   f32 folded bias  -(mean/std) @ W
        # text_ref         : [B, D]   f32 pre-normalized text features
        # out_ref          : [1, 1]   f32 per-step loss
        # acc_ref          : [2B, D]  f32 feature accumulator (scratch)
        k = pl.program_id(1)

        # --- _tensor_to_pil + CLIPProcessor rescale, fused in-kernel (VPU) --
        def preprocess(x):
            x = (x + 1.0) * 0.5
            x = jnp.clip(x, 0.0, 1.0)
            return jnp.floor(x * 255.0) * (1.0 / 255.0)  # uint8 round-trip
            # (mean/std normalization is folded into w_ref / b_ref)

        xp = preprocess(pred_ref[...])                     # [B, TK]
        xt = preprocess(tgt_ref[...])                      # [B, TK]
        # in-kernel, sublane-aligned stack -> ONE MXU dot per K-tile
        x = jnp.concatenate([xp, xt], axis=0).astype(jnp.bfloat16)  # [2B, TK]

        partial = jnp.dot(x, w_ref[...],
                          preferred_element_type=jnp.float32)       # [2B, D]

        @pl.when(k == 0)
        def _():
            acc_ref[...] = jnp.zeros_like(acc_ref)

        acc_ref[...] += partial

        @pl.when(k == pl.num_programs(1) - 1)
        def _():
            feats = acc_ref[...] + b_ref[...]              # [2B, D] f32
            pred_f = feats[:bsz, :]
            tgt_f = feats[bsz:, :]
            text_f = text_ref[...]                         # pre-normalized

            # fuse the 4 lane reductions into one [4B, D] product + 1 reduce
            prods = jnp.concatenate(
                [pred_f * pred_f, tgt_f * tgt_f, pred_f * tgt_f, pred_f * text_f],
                axis=0)                                    # [4B, D]
            sums = jnp.sum(prods, axis=-1, keepdims=True)  # [4B, 1]
            pp = sums[0 * bsz:1 * bsz]
            tt = sums[1 * bsz:2 * bsz]
            pt = sums[2 * bsz:3 * bsz]
            px = sums[3 * bsz:4 * bsz]

            # cosine via rsqrt (EUP); no full-vector normalize
            inv_p = jax.lax.rsqrt(jnp.maximum(pp, eps2))
            inv_t = jax.lax.rsqrt(jnp.maximum(tt, eps2))

            sim_img = pt * inv_p * inv_t                   # [B, 1]
            sim_txt = px * inv_p                           # [B, 1]

            # loss = (1 - mean(sim_img)) + text_w * (1 - mean(sim_txt))
            combined = sim_img + text_w * sim_txt
            total = jnp.sum(combined, axis=0, keepdims=True)   # [1, 1]
            out_ref[...] = (1.0 + text_w) - total * inv_b

    return kernel


def fold_preproc_into_proj(proj):
    """Fold the CLIP per-channel mean/std affine into the projection.

    (x - mean)/std @ W  ==  x @ (diag(1/std) W)  +  (-(mean/std) @ W)
    Returns (W' as bf16 [K, D], bias as f32 [1, D]).
    """
    mean_flat = jnp.broadcast_to(CLIP_MEAN.reshape(C, 1, 1), (C, HW, HW)).reshape(K)
    std_flat = jnp.broadcast_to(CLIP_STD.reshape(C, 1, 1), (C, HW, HW)).reshape(K)
    w_folded = proj * (1.0 / std_flat)[:, None]
    b_folded = -(mean_flat / std_flat) @ proj
    return w_folded.astype(jnp.bfloat16), b_folded.reshape(1, D).astype(jnp.float32)


def clip_loss_pallas(pred, target, w_bf16, bias_f32, text_feat_norm, text_weight):
    """pred/target: [S, B, C, H, W] in [-1, 1]. Returns per-step losses [S]."""
    s, bsz = pred.shape[:2]
    kdim = pred.shape[2] * pred.shape[3] * pred.shape[4]
    pred_flat = pred.reshape(s, bsz, kdim).astype(jnp.float32)   # no HBM concat
    tgt_flat = target.reshape(s, bsz, kdim).astype(jnp.float32)
    dmod = w_bf16.shape[1]
    nk = kdim // TK

    kernel = _make_kernel(bsz, text_weight)

    out = pl.pallas_call(
        kernel,
        out_shape=jax.ShapeDtypeStruct((s, 1, 1), jnp.float32),
        grid_spec=pltpu.PrefetchScalarGridSpec(
            num_scalar_prefetch=0,
            grid=(s, nk),
            in_specs=[
                pl.BlockSpec((None, bsz, TK), lambda si, ki: (si, 0, ki)),
                pl.BlockSpec((None, bsz, TK), lambda si, ki: (si, 0, ki)),
                pl.BlockSpec((TK, dmod), lambda si, ki: (ki, 0)),
                pl.BlockSpec((1, dmod), lambda si, ki: (0, 0)),
                pl.BlockSpec((None, bsz, dmod), lambda si, ki: (si, 0, 0)),
            ],
            out_specs=pl.BlockSpec((None, 1, 1), lambda si, ki: (si, 0, 0)),
            scratch_shapes=[pltpu.VMEM((2 * bsz, dmod), jnp.float32)],
        ),
        compiler_params=pltpu.CompilerParams(
            dimension_semantics=("parallel", "arbitrary")),
    )(pred_flat, tgt_flat, w_bf16, bias_f32, text_feat_norm)
    return out.reshape(s)


def clip_loss_ref(pred, target, proj, text_feat_norm, text_weight):
    """Pure-JAX f32 reference of the same forward (for a sanity check)."""
    s, bsz = pred.shape[:2]
    mean = CLIP_MEAN.reshape(1, 1, C, 1, 1)
    std = CLIP_STD.reshape(1, 1, C, 1, 1)

    def feats(t):
        t = (t + 1.0) / 2.0
        t = jnp.clip(t, 0.0, 1.0)
        t = jnp.floor(t * 255.0) / 255.0
        t = (t - mean) / std
        return t.reshape(s, bsz, -1) @ proj

    pf = feats(pred)
    tf = feats(target)
    pf = pf / jnp.maximum(jnp.linalg.norm(pf, axis=-1, keepdims=True), 1e-12)
    tf = tf / jnp.maximum(jnp.linalg.norm(tf, axis=-1, keepdims=True), 1e-12)
    loss = 1.0 - jnp.mean(jnp.sum(pf * tf, axis=-1), axis=-1)
    loss = loss + text_weight * (
        1.0 - jnp.mean(jnp.sum(pf * text_feat_norm, axis=-1), axis=-1))
    return loss


if __name__ == "__main__":
    key = jax.random.PRNGKey(0)
    k1, k2, k3, k4, k5 = jax.random.split(key, 5)

    # inputs in [-1, 1] as the module expects (S stacked NCHW micro-batches)
    pred = jax.random.uniform(k1, (S, B, C, HW, HW), jnp.float32, -1.0, 1.0)
    target = jax.random.uniform(k2, (S, B, C, HW, HW), jnp.float32, -1.0, 1.0)

    # frozen deterministic "image encoder" projection (see TODO above)
    proj = jax.random.normal(k3, (K, D), jnp.float32) / jnp.sqrt(K)
    w_bf16, bias_f32 = fold_preproc_into_proj(proj)

    # synthetic "text encoder": mean-pooled token embeddings, L2-normalized
    # once outside the kernel (loop-invariant).
    VOCAB, T = 64, 8
    embed = jax.random.normal(k4, (VOCAB, D), jnp.float32) / jnp.sqrt(D)
    tokens = jax.random.randint(k5, (S, B, T), 0, VOCAB)
    text_feat = jnp.mean(embed[tokens], axis=2)                     # [S, B, D]
    text_feat_norm = text_feat / jnp.maximum(
        jnp.linalg.norm(text_feat, axis=-1, keepdims=True), 1e-12)

    # text_prompts provided -> text weight 0.5 (pass 0.0 for the no-text path)
    TEXT_WEIGHT = 0.5
    losses = clip_loss_pallas(pred, target, w_bf16, bias_f32,
                              text_feat_norm, TEXT_WEIGHT)
    jax.block_until_ready(losses)

    ref = clip_loss_ref(pred, target, proj, text_feat_norm, TEXT_WEIGHT)
    assert jnp.allclose(losses, ref, atol=5e-2), (losses, ref)
    print("KERNEL_OK")
</pallas_src>

<mosaic_0001>
module attributes {stable_mosaic.version = 11 : i64} {
  func.func @kernel(%arg0: i32, %arg1: i32, %arg2: memref<1x8x256xf32, #tpu.memory_space<vmem>>, %arg3: memref<1x8x256xf32, #tpu.memory_space<vmem>>, %arg4: memref<256x128xbf16, #tpu.memory_space<vmem>>, %arg5: memref<1x128xf32, #tpu.memory_space<vmem>>, %arg6: memref<1x8x128xf32, #tpu.memory_space<vmem>>, %arg7: memref<1x1x1xf32, #tpu.memory_space<vmem>>, %arg8: memref<16x128xf32, #tpu.memory_space<vmem>>) attributes {dimension_semantics = [#tpu.dimension_semantics<parallel>, #tpu.dimension_semantics<arbitrary>], iteration_bounds = array<i64: 2, 3>, scalar_prefetch = 0 : i64, scratch_operands = 1 : i64, tpu.core_type = #tpu.core_type<tc>, window_params = [{transform_indices = @transform_0, window_bounds = array<i64: 1, 8, 256>}, {transform_indices = @transform_1, window_bounds = array<i64: 1, 8, 256>}, {transform_indices = @transform_2, window_bounds = array<i64: 256, 128>}, {pipeline_mode = #tpu.pipeline_mode<synchronous>, transform_indices = @transform_3, window_bounds = array<i64: 1, 128>}, {transform_indices = @transform_4, window_bounds = array<i64: 1, 8, 128>}, {transform_indices = @transform_5, window_bounds = array<i64: 1, 1, 1>}]} {
    %c0 = arith.constant 0 : index
    %c0_0 = arith.constant 0 : index
    %c0_1 = arith.constant 0 : index
    %0 = vector.load %arg2[%c0, %c0_0, %c0_1] : memref<1x8x256xf32, #tpu.memory_space<vmem>>, vector<1x8x256xf32>
    %1 = vector.shape_cast %0 : vector<1x8x256xf32> to vector<8x256xf32>
    %cst = arith.constant 1.000000e+00 : f32
    %2 = vector.broadcast %cst : f32 to vector<8x256xf32>
    %3 = arith.addf %1, %2 : vector<8x256xf32>
    %cst_2 = arith.constant 5.000000e-01 : f32
    %4 = vector.broadcast %cst_2 : f32 to vector<8x256xf32>
    %5 = arith.mulf %3, %4 : vector<8x256xf32>
    %cst_3 = arith.constant 0.000000e+00 : f32
    %cst_4 = arith.constant 1.000000e+00 : f32
    %6 = vector.broadcast %cst_3 : f32 to vector<8x256xf32>
    %7 = arith.maximumf %6, %5 : vector<8x256xf32>
    %8 = vector.broadcast %cst_4 : f32 to vector<8x256xf32>
    %9 = arith.minimumf %8, %7 : vector<8x256xf32>
    %cst_5 = arith.constant 2.550000e+02 : f32
    %10 = vector.broadcast %cst_5 : f32 to vector<8x256xf32>
    %11 = arith.mulf %9, %10 : vector<8x256xf32>
    %12 = math.floor %11 : vector<8x256xf32>
    %cst_6 = arith.constant 0.00392156886 : f32
    %13 = vector.broadcast %cst_6 : f32 to vector<8x256xf32>
    %14 = arith.mulf %12, %13 : vector<8x256xf32>
    %c0_7 = arith.constant 0 : index
    %c0_8 = arith.constant 0 : index
    %c0_9 = arith.constant 0 : index
    %15 = vector.load %arg3[%c0_7, %c0_8, %c0_9] : memref<1x8x256xf32, #tpu.memory_space<vmem>>, vector<1x8x256xf32>
    %16 = vector.shape_cast %15 : vector<1x8x256xf32> to vector<8x256xf32>
    %cst_10 = arith.constant 1.000000e+00 : f32
    %17 = vector.broadcast %cst_10 : f32 to vector<8x256xf32>
    %18 = arith.addf %16, %17 : vector<8x256xf32>
    %cst_11 = arith.constant 5.000000e-01 : f32
    %19 = vector.broadcast %cst_11 : f32 to vector<8x256xf32>
    %20 = arith.mulf %18, %19 : vector<8x256xf32>
    %cst_12 = arith.constant 0.000000e+00 : f32
    %cst_13 = arith.constant 1.000000e+00 : f32
    %21 = vector.broadcast %cst_12 : f32 to vector<8x256xf32>
    %22 = arith.maximumf %21, %20 : vector<8x256xf32>
    %23 = vector.broadcast %cst_13 : f32 to vector<8x256xf32>
    %24 = arith.minimumf %23, %22 : vector<8x256xf32>
    %cst_14 = arith.constant 2.550000e+02 : f32
    %25 = vector.broadcast %cst_14 : f32 to vector<8x256xf32>
    %26 = arith.mulf %24, %25 : vector<8x256xf32>
    %27 = math.floor %26 : vector<8x256xf32>
    %cst_15 = arith.constant 0.00392156886 : f32
    %28 = vector.broadcast %cst_15 : f32 to vector<8x256xf32>
    %29 = arith.mulf %27, %28 : vector<8x256xf32>
    %30 = tpu.concatenate %14, %29 in 0 : vector<8x256xf32>, vector<8x256xf32> -> vector<16x256xf32>
    %31 = arith.truncf %30 : vector<16x256xf32> to vector<16x256xbf16>
    %c0_16 = arith.constant 0 : index
    %c0_17 = arith.constant 0 : index
    %32 = vector.load %arg4[%c0_16, %c0_17] : memref<256x128xbf16, #tpu.memory_space<vmem>>, vector<256x128xbf16>
    %cst_18 = arith.constant dense<0.000000e+00> : vector<16x128xf32>
    %33 = tpu.matmul %31, %32, %cst_18 {dimension_numbers = #tpu.dot_dimension_numbers<[1], [0], [0], [1], [0, 0, 1, 1], [], []>} : vector<16x256xbf16>, vector<256x128xbf16>, vector<16x128xf32> -> vector<16x128xf32>
    %c0_i32 = arith.constant 0 : i32
    %34 = arith.cmpi eq, %arg1, %c0_i32 : i32
    %35 = arith.extui %34 : i1 to i32
    %c0_i32_19 = arith.constant 0 : i32
    %36 = arith.cmpi ne, %35, %c0_i32_19 : i32
    scf.if %36 {
      %cst_25 = arith.constant 0.000000e+00 : f32
      %43 = vector.broadcast %cst_25 : f32 to vector<16x128xf32>
      %c0_26 = arith.constant 0 : index
      %c0_27 = arith.constant 0 : index
      %44 = vector.load %arg8[%c0_26, %c0_27] : memref<16x128xf32, #tpu.memory_space<vmem>>, vector<16x128xf32>
      tpu.vector_store %arg8[%c0_26, %c0_27], %43 {strides = array<i32>} : memref<16x128xf32, #tpu.memory_space<vmem>>, vector<16x128xf32>,
    } else {
    }
    %c0_20 = arith.constant 0 : index
    %c0_21 = arith.constant 0 : index
    %37 = vector.load %arg8[%c0_20, %c0_21] : memref<16x128xf32, #tpu.memory_space<vmem>>, vector<16x128xf32>
    %38 = arith.addf %37, %33 : vector<16x128xf32>
    %c0_22 = arith.constant 0 : index
    %c0_23 = arith.constant 0 : index
    %39 = vector.load %arg8[%c0_22, %c0_23] : memref<16x128xf32, #tpu.memory_space<vmem>>, vector<16x128xf32>
    tpu.vector_store %arg8[%c0_22, %c0_23], %38 {strides = array<i32>} : memref<16x128xf32, #tpu.memory_space<vmem>>, vector<16x128xf32>,
    %c2_i32 = arith.constant 2 : i32
    %40 = arith.cmpi eq, %arg1, %c2_i32 : i32
    %41 = arith.extui %40 : i1 to i32
    %c0_i32_24 = arith.constant 0 : i32
    %42 = arith.cmpi ne, %41, %c0_i32_24 : i32
    scf.if %42 {
      %c0_25 = arith.constant 0 : index
      %c0_26 = arith.constant 0 : index
      %43 = vector.load %arg8[%c0_25, %c0_26] : memref<16x128xf32, #tpu.memory_space<vmem>>, vector<16x128xf32>
      %c0_27 = arith.constant 0 : index
      %c0_28 = arith.constant 0 : index
      %44 = vector.load %arg5[%c0_27, %c0_28] : memref<1x128xf32, #tpu.memory_space<vmem>>, vector<1x128xf32>
      %45 = vector.broadcast %44 : vector<1x128xf32> to vector<16x128xf32>
      %46 = arith.addf %43, %45 : vector<16x128xf32>
      %47 = vector.extract_strided_slice %46 {offsets = [0, 0], sizes = [8, 128], strides = [1, 1]} : vector<16x128xf32> to vector<8x128xf32>
      %48 = vector.extract_strided_slice %46 {offsets = [8, 0], sizes = [8, 128], strides = [1, 1]} : vector<16x128xf32> to vector<8x128xf32>
      %c0_29 = arith.constant 0 : index
      %c0_30 = arith.constant 0 : index
      %c0_31 = arith.constant 0 : index
      %49 = vector.load %arg6[%c0_29, %c0_30, %c0_31] : memref<1x8x128xf32, #tpu.memory_space<vmem>>, vector<1x8x128xf32>
      %50 = vector.shape_cast %49 : vector<1x8x128xf32> to vector<8x128xf32>
      %51 = arith.mulf %47, %47 : vector<8x128xf32>
      %52 = arith.mulf %48, %48 : vector<8x128xf32>
      %53 = arith.mulf %47, %48 : vector<8x128xf32>
      %54 = arith.mulf %47, %50 : vector<8x128xf32>
      %55 = tpu.concatenate %51, %52, %53, %54 in 0 : vector<8x128xf32>, vector<8x128xf32>, vector<8x128xf32>, vector<8x128xf32> -> vector<32x128xf32>
      %cst_32 = arith.constant dense<0.000000e+00> : vector<32xf32>
      %56 = vector.multi_reduction <add>, %55, %cst_32 [1] : vector<32x128xf32> to vector<32xf32>
      %57 = vector.shape_cast %56 : vector<32xf32> to vector<32x1xf32>
      %58 = vector.extract_strided_slice %57 {offsets = [0, 0], sizes = [8, 1], strides = [1, 1]} : vector<32x1xf32> to vector<8x1xf32>
      %59 = vector.extract_strided_slice %57 {offsets = [8, 0], sizes = [8, 1], strides = [1, 1]} : vector<32x1xf32> to vector<8x1xf32>
      %60 = vector.extract_strided_slice %57 {offsets = [16, 0], sizes = [8, 1], strides = [1, 1]} : vector<32x1xf32> to vector<8x1xf32>
      %61 = vector.extract_strided_slice %57 {offsets = [24, 0], sizes = [8, 1], strides = [1, 1]} : vector<32x1xf32> to vector<8x1xf32>
      %cst_33 = arith.constant 1.000000e-24 : f32
      %62 = vector.broadcast %cst_33 : f32 to vector<8x1xf32>
      %63 = arith.maximumf %58, %62 : vector<8x1xf32>
      %64 = math.rsqrt %63 : vector<8x1xf32>
      %cst_34 = arith.constant 1.000000e-24 : f32
      %65 = vector.broadcast %cst_34 : f32 to vector<8x1xf32>
      %66 = arith.maximumf %59, %65 : vector<8x1xf32>
      %67 = math.rsqrt %66 : vector<8x1xf32>
      %68 = arith.mulf %60, %64 : vector<8x1xf32>
      %69 = arith.mulf %68, %67 : vector<8x1xf32>
      %70 = arith.mulf %61, %64 : vector<8x1xf32>
      %cst_35 = arith.constant 5.000000e-01 : f32
      %71 = vector.broadcast %cst_35 : f32 to vector<8x1xf32>
      %72 = arith.mulf %71, %70 : vector<8x1xf32>
      %73 = arith.addf %69, %72 : vector<8x1xf32>
      %cst_36 = arith.constant dense<0.000000e+00> : vector<1xf32>
      %74 = vector.multi_reduction <add>, %73, %cst_36 [0] : vector<8x1xf32> to vector<1xf32>
      %75 = vector.shape_cast %74 : vector<1xf32> to vector<1x1xf32>
      %cst_37 = arith.constant 1.250000e-01 : f32
      %76 = vector.broadcast %cst_37 : f32 to vector<1x1xf32>
      %77 = arith.mulf %75, %76 : vector<1x1xf32>
      %cst_38 = arith.constant 1.500000e+00 : f32
      %78 = vector.broadcast %cst_38 : f32 to vector<1x1xf32>
      %79 = arith.subf %78, %77 : vector<1x1xf32>
      %c0_39 = arith.constant 0 : index
      %c0_40 = arith.constant 0 : index
      %c0_41 = arith.constant 0 : index
      %80 = vector.load %arg7[%c0_39, %c0_40, %c0_41] : memref<1x1x1xf32, #tpu.memory_space<vmem>>, vector<1x1x1xf32>
      %81 = vector.shape_cast %80 : vector<1x1x1xf32> to vector<1x1xf32>
      %82 = vector.shape_cast %79 : vector<1x1xf32> to vector<1x1x1xf32>
      tpu.vector_store %arg7[%c0_39, %c0_40, %c0_41], %82 {strides = array<i32>} : memref<1x1x1xf32, #tpu.memory_space<vmem>>, vector<1x1x1xf32>,
    } else {
    }
    return
  }
  func.func @transform_0(%arg0: i32, %arg1: i32) -> (i32, i32, i32) {
    %c0_i32 = arith.constant 0 : i32
    %c0_i32_0 = arith.constant 0 : i32
    return %arg0, %c0_i32, %arg1 : i32, i32, i32
  }
  func.func @transform_1(%arg0: i32, %arg1: i32) -> (i32, i32, i32) {
    %c0_i32 = arith.constant 0 : i32
    %c0_i32_0 = arith.constant 0 : i32
    return %arg0, %c0_i32, %arg1 : i32, i32, i32
  }
  func.func @transform_2(%arg0: i32, %arg1: i32) -> (i32, i32) {
    %c0_i32 = arith.constant 0 : i32
    %c0_i32_0 = arith.constant 0 : i32
    return %arg1, %c0_i32 : i32, i32
  }
  func.func @transform_3(%arg0: i32, %arg1: i32) -> (i32, i32) {
    %c0_i32 = arith.constant 0 : i32
    %c0_i32_0 = arith.constant 0 : i32
    %c0_i32_1 = arith.constant 0 : i32
    return %c0_i32, %c0_i32_0 : i32, i32
  }
  func.func @transform_4(%arg0: i32, %arg1: i32) -> (i32, i32, i32) {
    %c0_i32 = arith.constant 0 : i32
    %c0_i32_0 = arith.constant 0 : i32
    %c0_i32_1 = arith.constant 0 : i32
    return %arg0, %c0_i32, %c0_i32_0 : i32, i32, i32
  }
  func.func @transform_5(%arg0: i32, %arg1: i32) -> (i32, i32, i32) {
    %c0_i32 = arith.constant 0 : i32
    %c0_i32_0 = arith.constant 0 : i32
    %c0_i32_1 = arith.constant 0 : i32
    return %arg0, %c0_i32, %c0_i32_0 : i32, i32, i32
  }
}

</mosaic_0001>

<llo_original>
// kernel: tpu_custom_call.1
$region0: #{tpu_custom_call.1}
  #allocation0 [shape = 'u32[]', space=smem, size = 0x4, offset = 0x4, fixed_abs, tag = 'smem constant byte address 0x4 - core index']
  #allocation1 [shape = 'u32[144,128]{1,0:T(1,128)}', space=vmem, size = 0x12000, scoped, tag = 'internal scratch']
  #allocation2 [shape = 'f32[16,128]{1,0:T(8,128)}', space=vmem, size = 0x2000, scoped, tag = 'scratch operand']
  %s0 = inlined_call_operand.hbm [shape: f32[2,8,768], index: 0, kind: input, shape index: {}]
  %s1 = inlined_call_operand.hbm [shape: f32[2,8,768], index: 1, kind: input, shape index: {}]
  %s2 = inlined_call_operand.hbm [shape: bf16[768,128], index: 2, kind: input, shape index: {}]
  %s3 = inlined_call_operand.vmem [shape: f32[1,128], index: 3, kind: input, shape index: {}]
  %s4 = inlined_call_operand.hbm [shape: f32[2,8,128], index: 4, kind: input, shape index: {}]
  %s5 = inlined_call_operand.vmem [shape: f32[2,1,1], index: 5, kind: output, shape index: {}]
  %s6 = sld [smem:[#allocation0]]
  $region77: #{tpu_custom_call.1} parent=0
    _
  %s8 = ssub.s32 1, %s6
  %s9 = scalar_select 0, %s8, %s6
  $region1: #{tpu_custom_call.1} parent=0
    #allocation3 [shape = 'u8[16384]{0}', space=vmem, size = 0x4000, scoped, tag = 'input window, operand 0']
    #allocation4 [shape = 's32[2]{0}', space=sflag, size = 0x8, scoped, tag = 'scoped memory for tpu_custom_call.1']
    #allocation5 [shape = 'u8[16384]{0}', space=vmem, size = 0x4000, scoped, tag = 'input window, operand 1']
    #allocation6 [shape = 's32[2]{0}', space=sflag, size = 0x8, scoped, tag = 'scoped memory for tpu_custom_call.1']
    #allocation7 [shape = 'u8[131072]{0}', space=vmem, size = 0x20000, scoped, tag = 'input window, operand 2']
    #allocation8 [shape = 'u8[8192]{0}', space=vmem, size = 0x2000, scoped, tag = 'input window, operand 4']
    #allocation9 [shape = 's32[2]{0}', space=sflag, size = 0x8, scoped, tag = 'scoped memory for tpu_custom_call.1']
    %10 = vsyncpa [#allocation4], 0
    %s11 = scalar_lea.sflag [#allocation4], 1
    %12 = vsyncpa %s11, 0
    %13 = vsyncpa [#allocation6], 0
    %s14 = scalar_lea.sflag [#allocation6], 1
    %15 = vsyncpa %s14, 0
    %16 = vsyncpa [#allocation9], 0
    %s17 = scalar_lea.sflag [#allocation9], 1
    %18 = vsyncpa %s17, 0
    loop: start=0, step=1, limit=8
    $region2: #{tpu_custom_call.1} parent=1 // loop_pre_header
      _
    $region3: #{tpu_custom_call.1} parent=1 // loop_header
      %s20 = sphi 0, %s24
      %p21 = scmp.ge.s32.totalorder %s20, 8
      %s27 = sphi 0, %s39
      %s28 = sphi 0, %s35
      %s29 = sphi 0, %s27
      %s30 = sphi 0, %s28
      %s31 = sphi 0, %s29
      %s32 = sphi 0, %s30
      %s44 = sphi 0, %s46
      %s47 = sphi 0, %s44
      %s48 = sphi 0, %s47
      %s64 = sphi 0, %s48
      %s72 = sphi 0, %s74
      %s75 = sphi 0, %s72
      %s76 = sphi 0, %s75
      %s92 = sphi 0, %s76
      %s98 = sphi 0, %s100
      %s101 = sphi 0, %s98
      %s102 = sphi 0, %s101
      %s118 = sphi 0, %s102
      %s122 = sphi 0, %s122
      %s124 = sphi 0, %s122
      %s125 = sphi 0, %s124
      %s139 = sphi 0, %s125
      %s145 = sphi 0, %s147
      %s148 = sphi 0, %s145
      %s149 = sphi 0, %s148
      %s165 = sphi 0, %s149
      %s171 = sphi 0, %s173
      %s174 = sphi 0, %s171
      %s175 = sphi 0, %s174
      %s191 = sphi 0, %s175
    $region4: #{tpu_custom_call.1} parent=1 // loop_header_branch
      %23 = sbr.rel (%p21) target = $region8
    $region5: #{tpu_custom_call.1} parent=1 // loop_body
      %s25 = ssub.s32 %s20, 1
      %s26 = ssub.s32 %s20, 2
      %s33 = sadd.s32 1, %s28
      %p34 = scmp.ge.s32.totalorder %s33, 3
      %s35 = scalar_select %p34, 0, %s33
      %s36 = sadd.s32 1, %s27
      %s37 = scalar_select %p34, %s36, %s27
      %p38 = scmp.ge.s32.totalorder %s37, 2
      %s39 = scalar_select %p38, 0, %s37
      %s40 = ssub.s32 %s27, %s39
      %s41 = ssub.s32 %s28, %s35
      %s42 = sor.u32 %s40, %s41
      %p43 = scmp.eq.s32.totalorder %s42, 0
      %s45 = sadd.s32 %s44, 1
      %s46 = scalar_select %p43, %s44, %s45
      %p49 = pneg %p43
      %p50 = scmp.eq.s32.totalorder %s20, 5
      %p51 = por %p49, %p50
      %p52 = scmp.ne.s32.totalorder %s44, %s47
      %p53 = scmp.eq.s32.totalorder %s20, 0
      %p54 = por %p52, %p53
      %p55 = scmp.ne.s32.totalorder %s44, %s47
      %p56 = scmp.eq.s32.totalorder %s25, 5
      %p57 = por %p55, %p56
      %p58 = scmp.ne.s32.totalorder %s47, %s48
      %p59 = scmp.eq.s32.totalorder %s25, 0
      %p60 = por %p58, %p59
      %p61 = scmp.ne.s32.totalorder %s47, %s48
      %p62 = scmp.eq.s32.totalorder %s26, 5
      %p63 = por %p61, %p62
      %p65 = scmp.ne.s32.totalorder %s48, %s64
      %p66 = scmp.eq.s32.totalorder %s26, 0
      %p67 = por %p65, %p66
      %s68 = ssub.s32 %s27, %s39
      %s69 = ssub.s32 %s28, %s35
      %s70 = sor.u32 %s68, %s69
      %p71 = scmp.eq.s32.totalorder %s70, 0
      %s73 = sadd.s32 %s72, 1
      %s74 = scalar_select %p71, %s72, %s73
      %p77 = pneg %p71
      %p78 = scmp.eq.s32.totalorder %s20, 5
      %p79 = por %p77, %p78
      %p80 = scmp.ne.s32.totalorder %s72, %s75
      %p81 = scmp.eq.s32.totalorder %s20, 0
      %p82 = por %p80, %p81
      %p83 = scmp.ne.s32.totalorder %s72, %s75
      %p84 = scmp.eq.s32.totalorder %s25, 5
      %p85 = por %p83, %p84
      %p86 = scmp.ne.s32.totalorder %s75, %s76
      %p87 = scmp.eq.s32.totalorder %s25, 0
      %p88 = por %p86, %p87
      %p89 = scmp.ne.s32.totalorder %s75, %s76
      %p90 = scmp.eq.s32.totalorder %s26, 5
      %p91 = por %p89, %p90
      %p93 = scmp.ne.s32.totalorder %s76, %s92
      %p94 = scmp.eq.s32.totalorder %s26, 0
      %p95 = por %p93, %p94
      %s96 = ssub.s32 %s28, %s35
      %p97 = scmp.eq.s32.totalorder %s96, 0
      %s99 = sadd.s32 %s98, 1
      %s100 = scalar_select %p97, %s98, %s99
      %p103 = pneg %p97
      %p104 = scmp.eq.s32.totalorder %s20, 5
      %p105 = por %p103, %p104
      %p106 = scmp.ne.s32.totalorder %s98, %s101
      %p107 = scmp.eq.s32.totalorder %s20, 0
      %p108 = por %p106, %p107
      %p109 = scmp.ne.s32.totalorder %s98, %s101
      %p110 = scmp.eq.s32.totalorder %s25, 5
      %p111 = por %p109, %p110
      %p112 = scmp.ne.s32.totalorder %s101, %s102
      %p113 = scmp.eq.s32.totalorder %s25, 0
      %p114 = por %p112, %p113
      %p115 = scmp.ne.s32.totalorder %s101, %s102
      %p116 = scmp.eq.s32.totalorder %s26, 5
      %p117 = por %p115, %p116
      %p119 = scmp.ne.s32.totalorder %s102, %s118
      %p120 = scmp.eq.s32.totalorder %s26, 0
      %p121 = por %p119, %p120
      %s123 = sadd.s32 %s122, 1
      %p126 = scmp.eq.s32.totalorder %s20, 5
      %p127 = scmp.ne.s32.totalorder %s122, %s124
      %p128 = scmp.eq.s32.totalorder %s20, 0
      %p129 = por %p127, %p128
      %p130 = scmp.ne.s32.totalorder %s122, %s124
      %p131 = scmp.eq.s32.totalorder %s25, 5
      %p132 = por %p130, %p131
      %p133 = scmp.ne.s32.totalorder %s124, %s125
      %p134 = scmp.eq.s32.totalorder %s25, 0
      %p135 = por %p133, %p134
      %p136 = scmp.ne.s32.totalorder %s124, %s125
      %p137 = scmp.eq.s32.totalorder %s26, 5
      %p138 = por %p136, %p137
      %p140 = scmp.ne.s32.totalorder %s125, %s139
      %p141 = scmp.eq.s32.totalorder %s26, 0
      %p142 = por %p140, %p141
      %s143 = ssub.s32 %s27, %s39
      %p144 = scmp.eq.s32.totalorder %s143, 0
      %s146 = sadd.s32 %s145, 1
      %s147 = scalar_select %p144, %s145, %s146
      %p150 = pneg %p144
      %p151 = scmp.eq.s32.totalorder %s20, 5
      %p152 = por %p150, %p151
      %p153 = scmp.ne.s32.totalorder %s145, %s148
      %p154 = scmp.eq.s32.totalorder %s20, 0
      %p155 = por %p153, %p154
      %p156 = scmp.ne.s32.totalorder %s145, %s148
      %p157 = scmp.eq.s32.totalorder %s25, 5
      %p158 = por %p156, %p157
      %p159 = scmp.ne.s32.totalorder %s148, %s149
      %p160 = scmp.eq.s32.totalorder %s25, 0
      %p161 = por %p159, %p160
      %p162 = scmp.ne.s32.totalorder %s148, %s149
      %p163 = scmp.eq.s32.totalorder %s26, 5
      %p164 = por %p162, %p163
      %p166 = scmp.ne.s32.totalorder %s149, %s165
      %p167 = scmp.eq.s32.totalorder %s26, 0
      %p168 = por %p166, %p167
      %s169 = ssub.s32 %s27, %s39
      %p170 = scmp.eq.s32.totalorder %s169, 0
      %s172 = sadd.s32 %s171, 1
      %s173 = scalar_select %p170, %s171, %s172
      %p176 = pneg %p170
      %p177 = scmp.eq.s32.totalorder %s20, 5
      %p178 = por %p176, %p177
      %p179 = scmp.ne.s32.totalorder %s171, %s174
      %p180 = scmp.eq.s32.totalorder %s20, 0
      %p181 = por %p179, %p180
      %p182 = scmp.ne.s32.totalorder %s171, %s174
      %p183 = scmp.eq.s32.totalorder %s25, 5
      %p184 = por %p182, %p183
      %p185 = scmp.ne.s32.totalorder %s174, %s175
      %p186 = scmp.eq.s32.totalorder %s25, 0
      %p187 = por %p185, %p186
      %p188 = scmp.ne.s32.totalorder %s174, %s175
      %p189 = scmp.eq.s32.totalorder %s26, 5
      %p190 = por %p188, %p189
      %p192 = scmp.ne.s32.totalorder %s175, %s191
      %p193 = scmp.eq.s32.totalorder %s26, 0
      %p194 = por %p192, %p193
      %p195 = scmp.le.s32.totalorder 1, %s20
      %p196 = scmp.lt.s32.totalorder %s20, 7
      %p197 = pnand %p195, %p196
      %p198 = pneg %p197
      // Predicated region
      $region9: #{tpu_custom_call.1} parent=5 // pred_check
        _
      $region10: #{tpu_custom_call.1} parent=5 // pred_check_branch
        %200 = sbr.rel (%p197) target = $region12
      $region11: #{tpu_custom_call.1} parent=5 // pred_region
        %s201 = ssub.s32 %s20, 1
        // Predicated region
        $region13: #{tpu_custom_call.1} parent=11 // pred_check
          %p202 = pneg %p135
        $region14: #{tpu_custom_call.1} parent=11 // pred_check_branch
          %204 = sbr.rel (%p202) target = $region16
        $region15: #{tpu_custom_call.1} parent=11 // pred_region
          _
        $region16: #{tpu_custom_call.1} parent=11 // pred_fallthru
          _
      $region12: #{tpu_custom_call.1} parent=5 // pred_fallthru
        _
      %p205 = scmp.lt.s32.totalorder %s20, 6
      // Predicated region
      $region17: #{tpu_custom_call.1} parent=5 // pred_check
        %p206 = pneg %p205
      $region18: #{tpu_custom_call.1} parent=5 // pred_check_branch
        %208 = sbr.rel (%p206) target = $region20
      $region19: #{tpu_custom_call.1} parent=5 // pred_region
        // Predicated region
        $region21: #{tpu_custom_call.1} parent=19 // pred_check
          %p209 = pneg %p54
        $region22: #{tpu_custom_call.1} parent=19 // pred_check_branch
          %211 = sbr.rel (%p209) target = $region24
        $region23: #{tpu_custom_call.1} parent=19 // pred_region
          %s212 = sand.u32 %s44, 1
          %s213 = scalar_lea.sflag [#allocation4], %s212
          %s214 = sand.u32 %s44, 1
          %s215 = smul.addr %s214, 16
          %s216 = scalar_lea.vmem [#allocation3], %s215
          %s217 = smul.u32 2, %s28
          %s219 = ssub.s32 256, 256
          %220 = vsyncadd %s213, %s219
          %s221 = smul.addr %s27, 6
          %s222 = sadd.s32 %s217, %s221
          %s223 = smul.addr %s222, 128
          %s224 = scalar_lea.hbm %s0, %s223
          %s226 = sshll.u32 %s216, 4
          %s227 = int_to_ptr.vmem [resolvable:$true] %s226
          %229 = dma.hbm_to_vmem [thread:$0]  %s224, 256, %s227, %s213
        $region24: #{tpu_custom_call.1} parent=19 // pred_fallthru
          _
        // Predicated region
        $region25: #{tpu_custom_call.1} parent=19 // pred_check
          %p230 = pneg %p82
        $region26: #{tpu_custom_call.1} parent=19 // pred_check_branch
          %232 = sbr.rel (%p230) target = $region28
        $region27: #{tpu_custom_call.1} parent=19 // pred_region
          %s233 = sand.u32 %s20, 1
          %s234 = scalar_lea.sflag [#allocation6], %s233
          %s235 = sand.u32 %s72, 1
          %s236 = smul.addr %s235, 16
          %s237 = scalar_lea.vmem [#allocation5], %s236
          %s238 = smul.u32 2, %s28
          %s240 = ssub.s32 256, 256
          %241 = vsyncadd %s234, %s240
          %s242 = smul.addr %s27, 6
          %s243 = sadd.s32 %s238, %s242
          %s244 = smul.addr %s243, 128
          %s245 = scalar_lea.hbm %s1, %s244
          %s247 = sshll.u32 %s237, 4
          %s248 = int_to_ptr.vmem [resolvable:$true] %s247
          %250 = dma.hbm_to_vmem [thread:$0]  %s245, 256, %s248, %s234
        $region28: #{tpu_custom_call.1} parent=19 // pred_fallthru
          _
        // Predicated region
        $region29: #{tpu_custom_call.1} parent=19 // pred_check
          %p251 = pneg %p108
        $region30: #{tpu_custom_call.1} parent=19 // pred_check_branch
          %253 = sbr.rel (%p251) target = $region32
        $region31: #{tpu_custom_call.1} parent=19 // pred_region
          %s254 = sand.u32 %s20, 1
          %s255 = scalar_lea.sflag [#allocation6], %s254
          %s256 = sand.u32 %s98, 1
          %s257 = smul.addr %s256, 128
          %s258 = scalar_lea.vmem [#allocation7], %s257
          %s259 = smul.u32 32, %s28
          %s261 = ssub.s32 2048, 2048
          %262 = vsyncadd %s255, %s261
          %s263 = smul.addr %s259, 64
          %s264 = scalar_lea.hbm %s2, %s263
          %s265 = sshll.u32 %s258, 4
          %s266 = int_to_ptr.vmem [resolvable:$true] %s265
          %271 = dma.hbm_to_vmem [thread:$0]  %s264, 2048, %s266, %s255, 64, 64, 4
        $region32: #{tpu_custom_call.1} parent=19 // pred_fallthru
          _
        // Predicated region
        $region33: #{tpu_custom_call.1} parent=19 // pred_check
          %p272 = pneg %p155
        $region34: #{tpu_custom_call.1} parent=19 // pred_check_branch
          %274 = sbr.rel (%p272) target = $region36
        $region35: #{tpu_custom_call.1} parent=19 // pred_region
          %s275 = sand.u32 %s145, 1
          %s276 = scalar_lea.sflag [#allocation9], %s275
          %s277 = sand.u32 %s145, 1
          %s278 = smul.addr %s277, 8
          %s279 = scalar_lea.vmem [#allocation8], %s278
          %s281 = ssub.s32 128, 128
          %282 = vsyncadd %s276, %s281
          %s283 = smul.addr %s27, 128
          %s284 = scalar_lea.hbm %s4, %s283
          %s286 = sshll.u32 %s279, 4
          %s287 = int_to_ptr.vmem [resolvable:$true] %s286
          %289 = dma.hbm_to_vmem [thread:$0]  %s284, 128, %s287, %s276
        $region36: #{tpu_custom_call.1} parent=19 // pred_fallthru
          _
      $region20: #{tpu_custom_call.1} parent=5 // pred_fallthru
        _
      %p290 = scmp.le.s32.totalorder 1, %s20
      %p291 = scmp.lt.s32.totalorder %s20, 7
      %p292 = pnand %p290, %p291
      %p293 = pneg %p292
      // Predicated region
      $region37: #{tpu_custom_call.1} parent=5 // pred_check
        _
      $region38: #{tpu_custom_call.1} parent=5 // pred_check_branch
        %295 = sbr.rel (%p292) target = $region40
      $region39: #{tpu_custom_call.1} parent=5 // pred_region
        %s296 = ssub.s32 %s20, 1
        %s297 = sand.u32 %s47, 1
        %s298 = scalar_lea.sflag [#allocation4], %s297
        %s299 = sand.u32 %s47, 1
        %s300 = smul.addr %s299, 16
        %s301 = scalar_lea.vmem [#allocation3], %s300
        // Predicated region
        $region41: #{tpu_custom_call.1} parent=39 // pred_check
          %p302 = pneg %p60
        $region42: #{tpu_custom_call.1} parent=39 // pred_check_branch
          %304 = sbr.rel (%p302) target = $region44
        $region43: #{tpu_custom_call.1} parent=39 // pred_region
          %305 = dma.done %s298, 256
        $region44: #{tpu_custom_call.1} parent=39 // pred_fallthru
          _
        %s306 = sand.u32 %s25, 1
        %s307 = scalar_lea.sflag [#allocation6], %s306
        %s308 = sand.u32 %s75, 1
        %s309 = smul.addr %s308, 16
        %s310 = scalar_lea.vmem [#allocation5], %s309
        // Predicated region
        $region45: #{tpu_custom_call.1} parent=39 // pred_check
          %p311 = pneg %p88
        $region46: #{tpu_custom_call.1} parent=39 // pred_check_branch
          %313 = sbr.rel (%p311) target = $region48
        $region47: #{tpu_custom_call.1} parent=39 // pred_region
          %314 = dma.done %s307, 256
        $region48: #{tpu_custom_call.1} parent=39 // pred_fallthru
          _
        %s315 = sand.u32 %s25, 1
        %s316 = scalar_lea.sflag [#allocation6], %s315
        %s317 = sand.u32 %s101, 1
        %s318 = smul.addr %s317, 128
        %s319 = scalar_lea.vmem [#allocation7], %s318
        // Predicated region
        $region49: #{tpu_custom_call.1} parent=39 // pred_check
          %p320 = pneg %p114
        $region50: #{tpu_custom_call.1} parent=39 // pred_check_branch
          %322 = sbr.rel (%p320) target = $region52
        $region51: #{tpu_custom_call.1} parent=39 // pred_region
          %323 = dma.done %s316, 2048
        $region52: #{tpu_custom_call.1} parent=39 // pred_fallthru
          _
        %s324 = sand.u32 %s148, 1
        %s325 = scalar_lea.sflag [#allocation9], %s324
        %s326 = sand.u32 %s148, 1
        %s327 = smul.addr %s326, 8
        %s328 = scalar_lea.vmem [#allocation8], %s327
        // Predicated region
        $region53: #{tpu_custom_call.1} parent=39 // pred_check
          %p329 = pneg %p161
        $region54: #{tpu_custom_call.1} parent=39 // pred_check_branch
          %331 = sbr.rel (%p329) target = $region56
        $region55: #{tpu_custom_call.1} parent=39 // pred_region
          %332 = dma.done %s325, 128
        $region56: #{tpu_custom_call.1} parent=39 // pred_fallthru
          _
        %s333 = sand.u32 %s47, 1
        %s334 = scalar_lea.sflag [#allocation4], %s333
        %s335 = sand.u32 %s47, 1
        %s336 = smul.addr %s335, 16
        %s337 = scalar_lea.vmem [#allocation3], %s336
        %p338 = pneg %p60
        %p339 = pneg %p57
        %s340 = sand.u32 %s25, 1
        %s341 = scalar_lea.sflag [#allocation6], %s340
        %s342 = sand.u32 %s75, 1
        %s343 = smul.addr %s342, 16
        %s344 = scalar_lea.vmem [#allocation5], %s343
        %p345 = pneg %p88
        %p346 = pneg %p85
        %s347 = sand.u32 %s25, 1
        %s348 = scalar_lea.sflag [#allocation6], %s347
        %s349 = sand.u32 %s101, 1
        %s350 = smul.addr %s349, 128
        %s351 = scalar_lea.vmem [#allocation7], %s350
        %p352 = pneg %p114
        %p353 = pneg %p111
        %p354 = pneg %p135
        %p355 = pneg %p132
        %s356 = sand.u32 %s148, 1
        %s357 = scalar_lea.sflag [#allocation9], %s356
        %s358 = sand.u32 %s148, 1
        %s359 = smul.addr %s358, 8
        %s360 = scalar_lea.vmem [#allocation8], %s359
        %p361 = pneg %p161
        %p362 = pneg %p158
        %p363 = pneg %p187
        %p364 = pneg %p184
        %p365 = scmp.lt.s32.totalorder %s29, 1
        %s366 = scalar_select %p365, %s29, 1
        %s367 = scalar_lea.vmem %s5, %s366
        %s368 = smul.u32 2, %s30
        %s369 = smul.u32 2, %s30
        %s370 = smul.u32 32, %s30
        %p371 = scmp.lt.s32.totalorder %s29, 1
        %s372 = scalar_select %p371, %s29, 1
        %s373 = scalar_lea.vmem %s5, %s372
        %v375 = vld [vmem:[%s301] sm:$0xff]
        %v376 = vld [vmem:[%s301 + $0x8] sm:$0xff]
        %v377 = vadd.f32 %v375, 1.0
        %v378 = vadd.f32 %v376, 1.0
        %v379 = vmul.f32 %v377, 0.5
        %v380 = vmul.f32 %v378, 0.5
        %v381 = vmax.f32 %v379, 0.0
        %v382 = vmax.f32 %v380, 0.0
        %v383 = vmin.f32 %v381, 1.0
        %v384 = vmin.f32 %v382, 1.0
        %v385 = vmul.f32 %v383, 255.0
        %v386 = vmul.f32 %v384, 255.0
        %v387 = vfloor.f32 %v385
        %v388 = vfloor.f32 %v386
        %v389 = vmul.f32 %v387, 0.003921569
        %v390 = vmul.f32 %v388, 0.003921569
        %v391 = vld [vmem:[%s310] sm:$0xff]
        %v392 = vld [vmem:[%s310 + $0x8] sm:$0xff]
        %v393 = vadd.f32 %v391, 1.0
        %v394 = vadd.f32 %v392, 1.0
        %v395 = vmul.f32 %v393, 0.5
        %v396 = vmul.f32 %v394, 0.5
        %v397 = vmax.f32 %v395, 0.0
        %v398 = vmax.f32 %v396, 0.0
        %v399 = vmin.f32 %v397, 1.0
        %v400 = vmin.f32 %v398, 1.0
        %v401 = vmul.f32 %v399, 255.0
        %v402 = vmul.f32 %v400, 255.0
        %v403 = vfloor.f32 %v401
        %v404 = vfloor.f32 %v402
        %v405 = vmul.f32 %v403, 0.003921569
        %v406 = vmul.f32 %v404, 0.003921569
        %v407 = vpack.c.bf16 %v405, %v389
        %v408 = vpack.c.bf16 %v406, %v390
        %v409 = vld [vmem:[%s319] sm:$0xf]
        %v410 = vld [vmem:[%s319 + $0x4] sm:$0xf]
        %v411 = vld [vmem:[%s319 + $0x8] sm:$0xf]
        %v412 = vld [vmem:[%s319 + $0xc] sm:$0xf]
        %v413 = vld [vmem:[%s319 + $0x10] sm:$0xf]
        %v414 = vld [vmem:[%s319 + $0x14] sm:$0xf]
        %v415 = vld [vmem:[%s319 + $0x18] sm:$0xf]
        %v416 = vld [vmem:[%s319 + $0x1c] sm:$0xf]
        %v417 = vld [vmem:[%s319 + $0x20] sm:$0xf]
        %v418 = vld [vmem:[%s319 + $0x24] sm:$0xf]
        %v419 = vld [vmem:[%s319 + $0x28] sm:$0xf]
        %v420 = vld [vmem:[%s319 + $0x2c] sm:$0xf]
        %v421 = vld [vmem:[%s319 + $0x30] sm:$0xf]
        %v422 = vld [vmem:[%s319 + $0x34] sm:$0xf]
        %v423 = vld [vmem:[%s319 + $0x38] sm:$0xf]
        %v424 = vld [vmem:[%s319 + $0x3c] sm:$0xf]
        %v425 = vld [vmem:[%s319 + $0x40] sm:$0xf]
        %v426 = vld [vmem:[%s319 + $0x44] sm:$0xf]
        %v427 = vld [vmem:[%s319 + $0x48] sm:$0xf]
        %v428 = vld [vmem:[%s319 + $0x4c] sm:$0xf]
        %v429 = vld [vmem:[%s319 + $0x50] sm:$0xf]
        %v430 = vld [vmem:[%s319 + $0x54] sm:$0xf]
        %v431 = vld [vmem:[%s319 + $0x58] sm:$0xf]
        %v432 = vld [vmem:[%s319 + $0x5c] sm:$0xf]
        %v433 = vld [vmem:[%s319 + $0x60] sm:$0xf]
        %v434 = vld [vmem:[%s319 + $0x64] sm:$0xf]
        %v435 = vld [vmem:[%s319 + $0x68] sm:$0xf]
        %v436 = vld [vmem:[%s319 + $0x6c] sm:$0xf]
        %v437 = vld [vmem:[%s319 + $0x70] sm:$0xf]
        %v438 = vld [vmem:[%s319 + $0x74] sm:$0xf]
        %v439 = vld [vmem:[%s319 + $0x78] sm:$0xf]
        %v440 = vld [vmem:[%s319 + $0x7c] sm:$0xf]
        %v473 = vunpack.c.l.b16 %v409
        %v474 = vunpack.c.l.b16 %v410
        %v475 = vunpack.c.l.b16 %v411
        %v476 = vunpack.c.l.b16 %v412
        %v477 = vunpack.c.l.b16 %v413
        %v478 = vunpack.c.l.b16 %v414
        %v479 = vunpack.c.l.b16 %v415
        %v480 = vunpack.c.l.b16 %v416
        %v481 = vunpack.c.l.b16 %v417
        %v482 = vunpack.c.l.b16 %v418
        %v483 = vunpack.c.l.b16 %v419
        %v484 = vunpack.c.l.b16 %v420
        %v485 = vunpack.c.l.b16 %v421
        %v486 = vunpack.c.l.b16 %v422
        %v487 = vunpack.c.l.b16 %v423
        %v488 = vunpack.c.l.b16 %v424
        %v489 = vunpack.c.l.b16 %v425
        %v490 = vunpack.c.l.b16 %v426
        %v491 = vunpack.c.l.b16 %v427
        %v492 = vunpack.c.l.b16 %v428
        %v493 = vunpack.c.l.b16 %v429
        %v494 = vunpack.c.l.b16 %v430
        %v495 = vunpack.c.l.b16 %v431
        %v496 = vunpack.c.l.b16 %v432
        %v497 = vunpack.c.l.b16 %v433
        %v498 = vunpack.c.l.b16 %v434
        %v499 = vunpack.c.l.b16 %v435
        %v500 = vunpack.c.l.b16 %v436
        %v501 = vunpack.c.l.b16 %v437
        %v502 = vunpack.c.l.b16 %v438
        %v503 = vunpack.c.l.b16 %v439
        %v504 = vunpack.c.l.b16 %v440
        %v505 = vpack.c.b16 %v474, %v473
        %v506 = vpack.c.b16 %v476, %v475
        %v507 = vpack.c.b16 %v478, %v477
        %v508 = vpack.c.b16 %v480, %v479
        %v509 = vpack.c.b16 %v482, %v481
        %v510 = vpack.c.b16 %v484, %v483
        %v511 = vpack.c.b16 %v486, %v485
        %v512 = vpack.c.b16 %v488, %v487
        %v513 = vpack.c.b16 %v490, %v489
        %v514 = vpack.c.b16 %v492, %v491
        %v515 = vpack.c.b16 %v494, %v493
        %v516 = vpack.c.b16 %v496, %v495
        %v517 = vpack.c.b16 %v498, %v497
        %v518 = vpack.c.b16 %v500, %v499
        %v519 = vpack.c.b16 %v502, %v501
        %v520 = vpack.c.b16 %v504, %v503
        %537 = vmatprep.subr.bf16.mxu0 0
        %538 = vmatpush1.bf16.msra.mxu0 %v505
        %539 = vmatprep.subr.bf16.mxu0 0
        %540 = vmatpush1.bf16.msra.mxu0 %v506
        %541 = vmatprep.subr.bf16.mxu0 0
        %542 = vmatpush1.bf16.msra.mxu0 %v507
        %543 = vmatprep.subr.bf16.mxu0 0
        %544 = vmatpush1.bf16.msra.mxu0 %v508
        %545 = vmatprep.subr.bf16.mxu0 0
        %546 = vmatpush1.bf16.msra.mxu0 %v509
        %547 = vmatprep.subr.bf16.mxu0 0
        %548 = vmatpush1.bf16.msra.mxu0 %v510
        %549 = vmatprep.subr.bf16.mxu0 0
        %550 = vmatpush1.bf16.msra.mxu0 %v511
        %551 = vmatprep.subr.bf16.mxu0 0
        %552 = vmatpush1.bf16.msra.mxu0 %v512
        %553 = vmatprep.subr.bf16.mxu0 0
        %554 = vmatpush1.bf16.msra.mxu0 %v513
        %555 = vmatprep.subr.bf16.mxu0 0
        %556 = vmatpush1.bf16.msra.mxu0 %v514
        %557 = vmatprep.subr.bf16.mxu0 0
        %558 = vmatpush1.bf16.msra.mxu0 %v515
        %559 = vmatprep.subr.bf16.mxu0 0
        %560 = vmatpush1.bf16.msra.mxu0 %v516
        %561 = vmatprep.subr.bf16.mxu0 0
        %562 = vmatpush1.bf16.msra.mxu0 %v517
        %563 = vmatprep.subr.bf16.mxu0 0
        %564 = vmatpush1.bf16.msra.mxu0 %v518
        %565 = vmatprep.subr.bf16.mxu0 0
        %566 = vmatpush1.bf16.msra.mxu0 %v519
        %567 = vmatprep.subr.bf16.mxu0 0
        %568 = vmatpush1.bf16.msra.mxu0 %v520
        %569 = vmatprep.mubr.bf16.mxu0 %v408
        %570 = vmatmul.mubr.bf16.gmra.mrb[0].mxu0 %v407
        %v571 = vpop.f32.mrb[0].mxu0
        %v572 = vadd.f32 0.0, %v571
        %v573 = vpop.f32.mrb[0].mxu0
        %v574 = vpop.f32.mrb[0].mxu0
        %v575 = vadd.f32 0.0, %v574
        %v576 = vpop.f32.mrb[0].mxu0
        %577 = vdwg.mxu0
        %p578 = scmp.eq.s32.totalorder %s30, 0
        // Predicated region
        $region57: #{tpu_custom_call.1} parent=39 // pred_check
          %p579 = pneg %p578
        $region58: #{tpu_custom_call.1} parent=39 // pred_check_branch
          %581 = sbr.rel (%p579) target = $region60
        $region59: #{tpu_custom_call.1} parent=39 // pred_region
          %582 = vst [vmem:[#allocation2] sm:$0xff] 0.0
          %583 = vst [vmem:[#allocation2 + $0x8] sm:$0xff] 0.0
        $region60: #{tpu_custom_call.1} parent=39 // pred_fallthru
          _
        %v584 = vld [vmem:[#allocation2] sm:$0xff]
        %v585 = vld [vmem:[#allocation2 + $0x8] sm:$0xff]
        %v586 = vadd.f32 %v584, %v572
        %v587 = vadd.f32 %v585, %v575
        %588 = vst [vmem:[#allocation2] sm:$0xff] %v586
        %589 = vst [vmem:[#allocation2 + $0x8] sm:$0xff] %v587
        %p590 = scmp.eq.s32.totalorder %s30, 2
        // Predicated region
        $region61: #{tpu_custom_call.1} parent=39 // pred_check
          %p591 = pneg %p590
        $region62: #{tpu_custom_call.1} parent=39 // pred_check_branch
          %593 = sbr.rel (%p591) target = $region64
        $region63: #{tpu_custom_call.1} parent=39 // pred_region
          %v594 = vld [vmem:[#allocation2] sm:$0xff]
          %v595 = vld [vmem:[#allocation2 + $0x8] sm:$0xff]
          %v596 = vld [vmem:[%s3] sm:$0x1]
          %v598 = vlaneseq
          %v599 = vshrl.u32 %v598, 7
          %v600 = vsub.s32 0, %v599
          %v601 = vrot.slane %v596, %v600
          %v603 = vadd.f32 %v594, %v601
          %v604 = vadd.f32 %v595, %v601
          %v605 = vld [vmem:[%s328] sm:$0xff]
          %v606 = vmul.f32 %v603, %v603
          %v607 = vmul.f32 %v604, %v604
          %v608 = vmul.f32 %v603, %v604
          %v609 = vmul.f32 %v603, %v605
          %610 = vadd.xlane.f32.xlu0 %v606
          %v611 = vpop.xlane.xlu0 %610
          %612 = vadd.xlane.f32.xlu0 %v607
          %v613 = vpop.xlane.xlu0 %612
          %614 = vadd.xlane.f32.xlu0 %v608
          %v615 = vpop.xlane.xlu0 %614
          %616 = vadd.xlane.f32.xlu0 %v609
          %v617 = vpop.xlane.xlu0 %616
          %v618 = vmax.f32 %v611, 1e-24
          %v619 = vrsqrt.pop %v618
          %v620 = vmax.f32 %v613, 1e-24
          %v621 = vrsqrt.pop %v620
          %v622 = vmul.f32 %v615, %v619
          %v623 = vmul.f32 %v622, %v621
          %v624 = vmul.f32 %v617, %v619
          %v625 = vmul.f32 %v624, 0.5
          %v626 = vadd.f32 %v623, %v625
          %v627 = vrot.slane %v626, 4
          %v628 = vadd.f32 %v626, %v627
          %v629 = vrot.slane %v628, 2
          %v630 = vadd.f32 %v628, %v629
          %v631 = vrot.slane %v630, 1
          %v632 = vadd.f32 %v630, %v631
          %v633 = vmul.f32 %v632, 0.125
          %v634 = vsub.f32 1.5, %v633
          %vm635 = vcmask 0
          %636 = vst.msk [vmem:[%s373] sm:$0x1] %vm635, %v634
        $region64: #{tpu_custom_call.1} parent=39 // pred_fallthru
          _
        %p637 = scmp.lt.s32.totalorder %s29, 1
        %s638 = scalar_select %p637, %s29, 1
        %s639 = scalar_lea.vmem %s5, %s638
        // Predicated region
        $region65: #{tpu_custom_call.1} parent=39 // pred_check
          %p640 = pneg %p184
        $region66: #{tpu_custom_call.1} parent=39 // pred_check_branch
          %642 = sbr.rel (%p640) target = $region68
        $region67: #{tpu_custom_call.1} parent=39 // pred_region
          _
        $region68: #{tpu_custom_call.1} parent=39 // pred_fallthru
          _
      $region40: #{tpu_custom_call.1} parent=5 // pred_fallthru
        _
      %p643 = scmp.le.s32.totalorder 2, %s20
      // Predicated region
      $region69: #{tpu_custom_call.1} parent=5 // pred_check
        %p644 = pneg %p643
      $region70: #{tpu_custom_call.1} parent=5 // pred_check_branch
        %646 = sbr.rel (%p644) target = $region72
      $region71: #{tpu_custom_call.1} parent=5 // pred_region
        %s647 = ssub.s32 %s20, 2
        // Predicated region
        $region73: #{tpu_custom_call.1} parent=71 // pred_check
          %p648 = pneg %p190
        $region74: #{tpu_custom_call.1} parent=71 // pred_check_branch
          %650 = sbr.rel (%p648) target = $region76
        $region75: #{tpu_custom_call.1} parent=71 // pred_region
          %p651 = scmp.lt.s32.totalorder %s31, 1
          %s652 = scalar_select %p651, %s31, 1
          %s653 = scalar_lea.vmem %s5, %s652
        $region76: #{tpu_custom_call.1} parent=71 // pred_fallthru
          _
      $region72: #{tpu_custom_call.1} parent=5 // pred_fallthru
        _
    $region6: #{tpu_custom_call.1} parent=1 // loop_footer
      %s24 = sadd.s32 1, %s20
    $region7: #{tpu_custom_call.1} parent=1 // loop_footer_branch
      %19 = sbr.rel target = $region3
    $region8: #{tpu_custom_call.1} parent=1 // loop_exit
      _
    %654 = vsyncpa [#allocation4], 1
    %s655 = scalar_lea.sflag [#allocation4], 1
    %656 = vsyncpa %s655, 1
    %657 = vsyncpa [#allocation6], 1
    %s658 = scalar_lea.sflag [#allocation6], 1
    %659 = vsyncpa %s658, 1
    %660 = vsyncpa [#allocation9], 1
    %s661 = scalar_lea.sflag [#allocation9], 1
    %662 = vsyncpa %s661, 1

</llo_original>
